<compile_context>
chip_gen: v7x
topology: tpu7x:2x2x1
jax: 0.10.0
libtpu: 0.0.40
codegen_flags: <defaults>
</compile_context>

<pallas_src>
import functools
import math

import jax
import jax.numpy as jnp
from jax import lax
from jax.experimental import pallas as pl
from jax.experimental.pallas import tpu as pltpu

_MIB = 1 << 20


def _vmem_capacity_bytes():
    """Physical VMEM per core; conservative 64 MiB (v7x) if the query fails."""
    try:
        return int(pltpu.get_tpu_info().vmem_capacity_bytes)
    except Exception:
        return 64 * _MIB


def _pick_row_tile(b, cap, fits):
    """Largest row tile (<=cap, multiple of 8) dividing b and passing `fits`."""
    for t in (512, 256, 128, 64, 32, 16, 8):
        if t <= cap and b % t == 0 and fits(t):
            return t
    return b


def _stage1_vmem_bytes(tm, d_img, d_txt, p, res_bufs):
    toks = 2 * tm * (d_img + d_txt) * 2                 # bf16 token rows, 2 buffers
    weights = res_bufs * (d_img + d_txt) * p * 2        # bf16 weights (resident)
    biases = res_bufs * 2 * p * 4                       # f32 biases (resident)
    outs = 2 * (2 * tm * p * 4 + 2 * tm * p * 2)        # f32 + bf16 embeddings
    return toks + weights + biases + outs + 4 * _MIB


def _stage2_vmem_bytes(tm, b, p, res_bufs):
    residents = res_bufs * 2 * b * p * 2                # bf16 embedding matrices
    logits_out = 2 * 2 * tm * b * 4                     # img + txt logits blocks
    ce_out = 2 * 2 * tm * 4
    mask_in = 2 * tm * 4
    interm = 4 * tm * b * 4                             # logits / exp temporaries
    return residents + logits_out + ce_out + mask_in + interm + 4 * _MIB


# ---------------------------------------------------------------------------
# Stage 1: CLS projection + L2 normalization (row-tiled, megacore-parallel).
# Emits both the f32 embeddings (module outputs) and bf16 copies for stage 2.
# ---------------------------------------------------------------------------
def _proj_norm_kernel(img_tok_ref, txt_tok_ref,
                      w_img_ref, b_img_ref, w_txt_ref, b_txt_ref,
                      img_f32_ref, txt_f32_ref, img_bf16_ref, txt_bf16_ref):
    def proj_norm(tok_ref, w_ref, b_ref):
        # bf16 operands, f32 MXU accumulation; bias add + L2 norm stay f32.
        p = jnp.dot(tok_ref[...], w_ref[...],
                    preferred_element_type=jnp.float32) + b_ref[...]
        ssq = jnp.sum(p * p, axis=-1, keepdims=True)
        # F.normalize(dim=-1): x / max(||x||, 1e-12) == x * rsqrt(max(||x||^2, 1e-24))
        return p * lax.rsqrt(jnp.maximum(ssq, 1e-24))

    img_emb = proj_norm(img_tok_ref, w_img_ref, b_img_ref)   # [TM, P] f32
    txt_emb = proj_norm(txt_tok_ref, w_txt_ref, b_txt_ref)   # [TM, P] f32

    img_f32_ref[...] = img_emb
    txt_f32_ref[...] = txt_emb
    img_bf16_ref[...] = img_emb.astype(jnp.bfloat16)
    txt_bf16_ref[...] = txt_emb.astype(jnp.bfloat16)


# ---------------------------------------------------------------------------
# Stage 2: similarity logits + masked per-row cross entropy, row-tiled over the
# batch ("parallel"). Both full bf16 embedding matrices stay resident in VMEM
# (single-buffered); each grid step computes [TM, B] blocks for both directions
# on the MXU (no transposes) and writes both logits blocks back to HBM.
# ---------------------------------------------------------------------------
def _logits_loss_kernel(tm, img_emb_ref, txt_emb_ref, mask_ref, temp_ref,
                        img_logits_ref, txt_logits_ref, ce_img_ref, ce_txt_ref):
    i = pl.program_id(0)
    temp = temp_ref[0]                               # exp(clamped scale), precomputed

    row0 = pl.multiple_of(i * tm, tm)
    img_blk = img_emb_ref[pl.ds(row0, tm), :]        # [TM, P] bf16
    txt_blk = txt_emb_ref[pl.ds(row0, tm), :]        # [TM, P] bf16
    m_blk = mask_ref[...]                            # [TM, 1] f32 (1.0 = keep)

    # Contract the last dims directly; the MXU consumes the resident [B, P]
    # matrices untransposed (no XLU transpose / [P, B] VMEM copy per step).
    dnums = (((1,), (1,)), ((), ()))
    logits_img = lax.dot_general(img_blk, txt_emb_ref[...], dnums,
                                 preferred_element_type=jnp.float32) * temp  # [TM, B]
    logits_txt = lax.dot_general(txt_blk, img_emb_ref[...], dnums,
                                 preferred_element_type=jnp.float32) * temp  # [TM, B]

    # CE target = diagonal logit; identical for both directions, computed once
    # as a row-wise dot product (no [B, B] iotas / selects).
    tgt = jnp.sum(img_blk.astype(jnp.float32) * txt_blk.astype(jnp.float32),
                  axis=-1, keepdims=True) * temp                              # [TM, 1]

    def row_lse(z):
        m = jnp.max(z, axis=-1, keepdims=True)
        return jnp.log(jnp.sum(jnp.exp(z - m), axis=-1, keepdims=True)) + m

    img_logits_ref[...] = logits_img
    txt_logits_ref[...] = logits_txt
    keep = m_blk > 0.0
    # jnp.where (not a 0-multiply) so NaN/Inf in masked-out rows cannot leak.
    ce_img_ref[...] = jnp.where(keep, row_lse(logits_img) - tgt, 0.0)
    ce_txt_ref[...] = jnp.where(keep, row_lse(logits_txt) - tgt, 0.0)


def _forward(img_tok, txt_tok, w_img, b_img, w_txt, b_txt, mask_f, temp,
             single_buffer_residents):
    B, d_img = img_tok.shape
    d_txt = txt_tok.shape[1]
    P = w_img.shape[1]

    vmem_cap = _vmem_capacity_bytes()
    budget = int(0.85 * vmem_cap)
    tile_cap = 512 if vmem_cap > 80 * _MIB else 256   # 512 on big-VMEM chips only
    res_bufs = 1 if single_buffer_residents else 2

    def resident_spec(shape):
        idx_map = lambda i: (0,) * len(shape)
        if single_buffer_residents:
            # Grid-invariant operand: single VMEM buffer (no double-buffering).
            return pl.BlockSpec(shape, idx_map, pipeline_mode=pl.Buffered(1))
        return pl.BlockSpec(shape, idx_map)

    def row_spec(t, d):
        return pl.BlockSpec((t, d), lambda i: (i, 0))

    # ---------------- stage 1: projection + L2 normalize ----------------
    tm1 = _pick_row_tile(
        B, tile_cap,
        lambda t: _stage1_vmem_bytes(t, d_img, d_txt, P, res_bufs) <= budget)
    grid1 = (B // tm1,)
    vmem1 = min(max(_stage1_vmem_bytes(tm1, d_img, d_txt, P, res_bufs),
                    32 * _MIB), vmem_cap)

    img_emb, txt_emb, img_bf16, txt_bf16 = pl.pallas_call(
        _proj_norm_kernel,
        out_shape=(
            jax.ShapeDtypeStruct((B, P), jnp.float32),
            jax.ShapeDtypeStruct((B, P), jnp.float32),
            jax.ShapeDtypeStruct((B, P), jnp.bfloat16),
            jax.ShapeDtypeStruct((B, P), jnp.bfloat16),
        ),
        grid=grid1,
        in_specs=[row_spec(tm1, d_img), row_spec(tm1, d_txt),
                  resident_spec((d_img, P)), resident_spec((1, P)),
                  resident_spec((d_txt, P)), resident_spec((1, P))],
        out_specs=(row_spec(tm1, P), row_spec(tm1, P),
                   row_spec(tm1, P), row_spec(tm1, P)),
        compiler_params=pltpu.CompilerParams(
            dimension_semantics=("parallel",), vmem_limit_bytes=vmem1),
    )(img_tok, txt_tok, w_img, b_img, w_txt, b_txt)

    # ---------------- stage 2: logits + masked per-row CE ----------------
    tm2 = _pick_row_tile(
        B, tile_cap,
        lambda t: _stage2_vmem_bytes(t, B, P, res_bufs) <= budget)
    grid2 = (B // tm2,)
    vmem2 = min(max(_stage2_vmem_bytes(tm2, B, P, res_bufs), 32 * _MIB), vmem_cap)

    smem_scalar = pl.BlockSpec((1,), lambda i: (0,),
                               memory_space=pltpu.MemorySpace.SMEM)

    image_logits, text_logits, ce_img_rows, ce_txt_rows = pl.pallas_call(
        functools.partial(_logits_loss_kernel, tm2),
        out_shape=(
            jax.ShapeDtypeStruct((B, B), jnp.float32),
            jax.ShapeDtypeStruct((B, B), jnp.float32),
            jax.ShapeDtypeStruct((B, 1), jnp.float32),
            jax.ShapeDtypeStruct((B, 1), jnp.float32),
        ),
        grid=grid2,
        in_specs=[resident_spec((B, P)), resident_spec((B, P)),
                  pl.BlockSpec((tm2, 1), lambda i: (i, 0)),
                  smem_scalar],
        out_specs=(pl.BlockSpec((tm2, B), lambda i: (i, 0)),
                   pl.BlockSpec((tm2, B), lambda i: (i, 0)),
                   pl.BlockSpec((tm2, 1), lambda i: (i, 0)),
                   pl.BlockSpec((tm2, 1), lambda i: (i, 0))),
        compiler_params=pltpu.CompilerParams(
            dimension_semantics=("parallel",), vmem_limit_bytes=vmem2),
    )(img_bf16, txt_bf16, mask_f, temp)

    return img_emb, txt_emb, image_logits, text_logits, ce_img_rows, ce_txt_rows


def flava_global_contrastive_loss(image_sequence, text_sequence, mask, params,
                                  image_embedding_index=0, text_embedding_index=0):
    B = image_sequence.shape[0]

    # CLS-token selection outside the kernel: [B, S, D] -> [B, D]. The matmul
    # operands (tokens + weights) are cast to bf16; accumulation is f32 on MXU.
    img_tok = image_sequence[:, image_embedding_index, :].astype(jnp.bfloat16)
    txt_tok = text_sequence[:, text_embedding_index, :].astype(jnp.bfloat16)
    w_img = params["w_img"].astype(jnp.bfloat16)
    w_txt = params["w_txt"].astype(jnp.bfloat16)

    mask_f = mask.astype(jnp.float32).reshape(B, 1)
    # nn.Parameter clamp_ happens outside the loss math in the torch module.
    clamped_scale = jnp.clip(params["logit_scale"].reshape(1), 0.0, 4.6052)
    temp = jnp.exp(clamped_scale)   # temperature hoisted out of the kernel

    args = (img_tok, txt_tok, w_img, params["b_img"], w_txt, params["b_txt"],
            mask_f, temp)
    try:
        outs = _forward(*args, single_buffer_residents=True)
    except Exception:
        # Fallback if this JAX build rejects pl.Buffered(1) on pallas_call
        # operands: use default (double-buffered) residents.
        outs = _forward(*args, single_buffer_residents=False)
    img_emb, txt_emb, image_logits, text_logits, ce_img_rows, ce_txt_rows = outs

    # Tiny epilogue (O(B) floats) kept in the wrapper so the grid axis above can
    # stay megacore-parallel; mask-count reciprocal computed once for both losses.
    inv_n = 1.0 / jnp.sum(mask_f)
    image_loss = jnp.sum(ce_img_rows) * inv_n
    text_loss = jnp.sum(ce_txt_rows) * inv_n
    loss = 0.5 * (image_loss + text_loss)

    return {
        "loss": loss,
        "image_logits": image_logits,
        "text_logits": text_logits,
        "image_loss": image_loss,
        "text_loss": text_loss,
        "text_embedding": txt_emb,
        "image_embedding": img_emb,
        "logit_scale": clamped_scale[0],
    }


def init_params(key, image_embedding_size, text_embedding_size, projection_size):
    """Deterministic init mimicking nn.Linear defaults (uniform +-1/sqrt(fan_in))."""
    k1, k2, k3, k4 = jax.random.split(key, 4)
    bi = 1.0 / math.sqrt(image_embedding_size)
    bt = 1.0 / math.sqrt(text_embedding_size)
    return {
        "w_img": jax.random.uniform(k1, (image_embedding_size, projection_size),
                                    jnp.float32, -bi, bi),
        "b_img": jax.random.uniform(k2, (1, projection_size), jnp.float32, -bi, bi),
        "w_txt": jax.random.uniform(k3, (text_embedding_size, projection_size),
                                    jnp.float32, -bt, bt),
        "b_txt": jax.random.uniform(k4, (1, projection_size), jnp.float32, -bt, bt),
        "logit_scale": jnp.array(math.log(1.0 / 0.07), dtype=jnp.float32),
    }


if __name__ == "__main__":
    key = jax.random.PRNGKey(0)
    B, S_IMG, S_TXT = 8, 8, 8
    D_IMG, D_TXT, PROJ = 32, 32, 32

    k_img, k_txt, k_param = jax.random.split(key, 3)
    image_sequence = jax.random.normal(k_img, (B, S_IMG, D_IMG), jnp.float32)
    text_sequence = jax.random.normal(k_txt, (B, S_TXT, D_TXT), jnp.float32)
    # boolean validity mask over the batch (one masked-out sample)
    mask = jnp.array([True] * (B - 1) + [False])

    params = init_params(k_param, D_IMG, D_TXT, PROJ)

    out = flava_global_contrastive_loss(image_sequence, text_sequence, mask, params,
                                        image_embedding_index=0,
                                        text_embedding_index=0)
    jax.block_until_ready(out)
    print("KERNEL_OK")
</pallas_src>

<mosaic_0001>
module attributes {stable_mosaic.version = 11 : i64} {
  func.func @_proj_norm_kernel(%arg0: i32, %arg1: memref<8x32xbf16, #tpu.memory_space<vmem>>, %arg2: memref<8x32xbf16, #tpu.memory_space<vmem>>, %arg3: memref<32x32xbf16, #tpu.memory_space<vmem>>, %arg4: memref<1x32xf32, #tpu.memory_space<vmem>>, %arg5: memref<32x32xbf16, #tpu.memory_space<vmem>>, %arg6: memref<1x32xf32, #tpu.memory_space<vmem>>, %arg7: memref<8x32xf32, #tpu.memory_space<vmem>>, %arg8: memref<8x32xf32, #tpu.memory_space<vmem>>, %arg9: memref<8x32xbf16, #tpu.memory_space<vmem>>, %arg10: memref<8x32xbf16, #tpu.memory_space<vmem>>) attributes {dimension_semantics = [#tpu.dimension_semantics<parallel>], iteration_bounds = array<i64: 1>, scalar_prefetch = 0 : i64, scratch_operands = 0 : i64, tpu.core_type = #tpu.core_type<tc>, window_params = [{transform_indices = @transform_0, window_bounds = array<i64: 8, 32>}, {transform_indices = @transform_1, window_bounds = array<i64: 8, 32>}, {pipeline_mode = #tpu.pipeline_mode<synchronous>, transform_indices = @transform_2, window_bounds = array<i64: 32, 32>}, {pipeline_mode = #tpu.pipeline_mode<synchronous>, transform_indices = @transform_3, window_bounds = array<i64: 1, 32>}, {pipeline_mode = #tpu.pipeline_mode<synchronous>, transform_indices = @transform_4, window_bounds = array<i64: 32, 32>}, {pipeline_mode = #tpu.pipeline_mode<synchronous>, transform_indices = @transform_5, window_bounds = array<i64: 1, 32>}, {transform_indices = @transform_6, window_bounds = array<i64: 8, 32>}, {transform_indices = @transform_7, window_bounds = array<i64: 8, 32>}, {transform_indices = @transform_8, window_bounds = array<i64: 8, 32>}, {transform_indices = @transform_9, window_bounds = array<i64: 8, 32>}]} {
    %c0 = arith.constant 0 : index
    %c0_0 = arith.constant 0 : index
    %0 = vector.load %arg1[%c0, %c0_0] : memref<8x32xbf16, #tpu.memory_space<vmem>>, vector<8x32xbf16>
    %c0_1 = arith.constant 0 : index
    %c0_2 = arith.constant 0 : index
    %1 = vector.load %arg3[%c0_1, %c0_2] : memref<32x32xbf16, #tpu.memory_space<vmem>>, vector<32x32xbf16>
    %cst = arith.constant dense<0.000000e+00> : vector<8x32xf32>
    %2 = tpu.matmul %0, %1, %cst {dimension_numbers = #tpu.dot_dimension_numbers<[1], [0], [0], [1], [0, 0, 1, 1], [], []>} : vector<8x32xbf16>, vector<32x32xbf16>, vector<8x32xf32> -> vector<8x32xf32>
    %c0_3 = arith.constant 0 : index
    %c0_4 = arith.constant 0 : index
    %3 = vector.load %arg4[%c0_3, %c0_4] : memref<1x32xf32, #tpu.memory_space<vmem>>, vector<1x32xf32>
    %4 = vector.broadcast %3 : vector<1x32xf32> to vector<8x32xf32>
    %5 = arith.addf %2, %4 : vector<8x32xf32>
    %6 = arith.mulf %5, %5 : vector<8x32xf32>
    %cst_5 = arith.constant dense<0.000000e+00> : vector<8xf32>
    %7 = vector.multi_reduction <add>, %6, %cst_5 [1] : vector<8x32xf32> to vector<8xf32>
    %8 = vector.shape_cast %7 : vector<8xf32> to vector<8x1xf32>
    %cst_6 = arith.constant 1.000000e-24 : f32
    %9 = vector.broadcast %cst_6 : f32 to vector<8x1xf32>
    %10 = arith.maximumf %8, %9 : vector<8x1xf32>
    %11 = math.rsqrt %10 : vector<8x1xf32>
    %12 = vector.broadcast %11 : vector<8x1xf32> to vector<8x32xf32>
    %13 = arith.mulf %5, %12 : vector<8x32xf32>
    %c0_7 = arith.constant 0 : index
    %c0_8 = arith.constant 0 : index
    %14 = vector.load %arg2[%c0_7, %c0_8] : memref<8x32xbf16, #tpu.memory_space<vmem>>, vector<8x32xbf16>
    %c0_9 = arith.constant 0 : index
    %c0_10 = arith.constant 0 : index
    %15 = vector.load %arg5[%c0_9, %c0_10] : memref<32x32xbf16, #tpu.memory_space<vmem>>, vector<32x32xbf16>
    %cst_11 = arith.constant dense<0.000000e+00> : vector<8x32xf32>
    %16 = tpu.matmul %14, %15, %cst_11 {dimension_numbers = #tpu.dot_dimension_numbers<[1], [0], [0], [1], [0, 0, 1, 1], [], []>} : vector<8x32xbf16>, vector<32x32xbf16>, vector<8x32xf32> -> vector<8x32xf32>
    %c0_12 = arith.constant 0 : index
    %c0_13 = arith.constant 0 : index
    %17 = vector.load %arg6[%c0_12, %c0_13] : memref<1x32xf32, #tpu.memory_space<vmem>>, vector<1x32xf32>
    %18 = vector.broadcast %17 : vector<1x32xf32> to vector<8x32xf32>
    %19 = arith.addf %16, %18 : vector<8x32xf32>
    %20 = arith.mulf %19, %19 : vector<8x32xf32>
    %cst_14 = arith.constant dense<0.000000e+00> : vector<8xf32>
    %21 = vector.multi_reduction <add>, %20, %cst_14 [1] : vector<8x32xf32> to vector<8xf32>
    %22 = vector.shape_cast %21 : vector<8xf32> to vector<8x1xf32>
    %cst_15 = arith.constant 1.000000e-24 : f32
    %23 = vector.broadcast %cst_15 : f32 to vector<8x1xf32>
    %24 = arith.maximumf %22, %23 : vector<8x1xf32>
    %25 = math.rsqrt %24 : vector<8x1xf32>
    %26 = vector.broadcast %25 : vector<8x1xf32> to vector<8x32xf32>
    %27 = arith.mulf %19, %26 : vector<8x32xf32>
    %c0_16 = arith.constant 0 : index
    %c0_17 = arith.constant 0 : index
    %28 = vector.load %arg7[%c0_16, %c0_17] : memref<8x32xf32, #tpu.memory_space<vmem>>, vector<8x32xf32>
    tpu.vector_store %arg7[%c0_16, %c0_17], %13 {strides = array<i32>} : memref<8x32xf32, #tpu.memory_space<vmem>>, vector<8x32xf32>,
    %c0_18 = arith.constant 0 : index
    %c0_19 = arith.constant 0 : index
    %29 = vector.load %arg8[%c0_18, %c0_19] : memref<8x32xf32, #tpu.memory_space<vmem>>, vector<8x32xf32>
    tpu.vector_store %arg8[%c0_18, %c0_19], %27 {strides = array<i32>} : memref<8x32xf32, #tpu.memory_space<vmem>>, vector<8x32xf32>,
    %30 = arith.truncf %13 : vector<8x32xf32> to vector<8x32xbf16>
    %c0_20 = arith.constant 0 : index
    %c0_21 = arith.constant 0 : index
    %31 = vector.load %arg9[%c0_20, %c0_21] : memref<8x32xbf16, #tpu.memory_space<vmem>>, vector<8x32xbf16>
    tpu.vector_store %arg9[%c0_20, %c0_21], %30 {strides = array<i32>} : memref<8x32xbf16, #tpu.memory_space<vmem>>, vector<8x32xbf16>,
    %32 = arith.truncf %27 : vector<8x32xf32> to vector<8x32xbf16>
    %c0_22 = arith.constant 0 : index
    %c0_23 = arith.constant 0 : index
    %33 = vector.load %arg10[%c0_22, %c0_23] : memref<8x32xbf16, #tpu.memory_space<vmem>>, vector<8x32xbf16>
    tpu.vector_store %arg10[%c0_22, %c0_23], %32 {strides = array<i32>} : memref<8x32xbf16, #tpu.memory_space<vmem>>, vector<8x32xbf16>,
    return
  }
  func.func @transform_0(%arg0: i32) -> (i32, i32) {
    %c0_i32 = arith.constant 0 : i32
    %c0_i32_0 = arith.constant 0 : i32
    return %arg0, %c0_i32 : i32, i32
  }
  func.func @transform_1(%arg0: i32) -> (i32, i32) {
    %c0_i32 = arith.constant 0 : i32
    %c0_i32_0 = arith.constant 0 : i32
    return %arg0, %c0_i32 : i32, i32
  }
  func.func @transform_2(%arg0: i32) -> (i32, i32) {
    %c0_i32 = arith.constant 0 : i32
    %c0_i32_0 = arith.constant 0 : i32
    %c0_i32_1 = arith.constant 0 : i32
    return %c0_i32, %c0_i32_0 : i32, i32
  }
  func.func @transform_3(%arg0: i32) -> (i32, i32) {
    %c0_i32 = arith.constant 0 : i32
    %c0_i32_0 = arith.constant 0 : i32
    %c0_i32_1 = arith.constant 0 : i32
    return %c0_i32, %c0_i32_0 : i32, i32
  }
  func.func @transform_4(%arg0: i32) -> (i32, i32) {
    %c0_i32 = arith.constant 0 : i32
    %c0_i32_0 = arith.constant 0 : i32
    %c0_i32_1 = arith.constant 0 : i32
    return %c0_i32, %c0_i32_0 : i32, i32
  }
  func.func @transform_5(%arg0: i32) -> (i32, i32) {
    %c0_i32 = arith.constant 0 : i32
    %c0_i32_0 = arith.constant 0 : i32
    %c0_i32_1 = arith.constant 0 : i32
    return %c0_i32, %c0_i32_0 : i32, i32
  }
  func.func @transform_6(%arg0: i32) -> (i32, i32) {
    %c0_i32 = arith.constant 0 : i32
    %c0_i32_0 = arith.constant 0 : i32
    return %arg0, %c0_i32 : i32, i32
  }
  func.func @transform_7(%arg0: i32) -> (i32, i32) {
    %c0_i32 = arith.constant 0 : i32
    %c0_i32_0 = arith.constant 0 : i32
    return %arg0, %c0_i32 : i32, i32
  }
  func.func @transform_8(%arg0: i32) -> (i32, i32) {
    %c0_i32 = arith.constant 0 : i32
    %c0_i32_0 = arith.constant 0 : i32
    return %arg0, %c0_i32 : i32, i32
  }
  func.func @transform_9(%arg0: i32) -> (i32, i32) {
    %c0_i32 = arith.constant 0 : i32
    %c0_i32_0 = arith.constant 0 : i32
    return %arg0, %c0_i32 : i32, i32
  }
}

module attributes {stable_mosaic.version = 11 : i64} {
  func.func @_proj_norm_kernel(%arg0: i32, %arg1: memref<8x32xbf16, #tpu.memory_space<vmem>>, %arg2: memref<8x32xbf16, #tpu.memory_space<vmem>>, %arg3: memref<32x32xbf16, #tpu.memory_space<vmem>>, %arg4: memref<1x32xf32, #tpu.memory_space<vmem>>, %arg5: memref<32x32xbf16, #tpu.memory_space<vmem>>, %arg6: memref<1x32xf32, #tpu.memory_space<vmem>>, %arg7: memref<8x32xf32, #tpu.memory_space<vmem>>, %arg8: memref<8x32xf32, #tpu.memory_space<vmem>>, %arg9: memref<8x32xbf16, #tpu.memory_space<vmem>>, %arg10: memref<8x32xbf16, #tpu.memory_space<vmem>>) attributes {dimension_semantics = [#tpu.dimension_semantics<parallel>], iteration_bounds = array<i64: 1>, scalar_prefetch = 0 : i64, scratch_operands = 0 : i64, tpu.core_type = #tpu.core_type<tc>, window_params = [{transform_indices = @transform_0, window_bounds = array<i64: 8, 32>}, {transform_indices = @transform_1, window_bounds = array<i64: 8, 32>}, {pipeline_mode = #tpu.pipeline_mode<synchronous>, transform_indices = @transform_2, window_bounds = array<i64: 32, 32>}, {pipeline_mode = #tpu.pipeline_mode<synchronous>, transform_indices = @transform_3, window_bounds = array<i64: 1, 32>}, {pipeline_mode = #tpu.pipeline_mode<synchronous>, transform_indices = @transform_4, window_bounds = array<i64: 32, 32>}, {pipeline_mode = #tpu.pipeline_mode<synchronous>, transform_indices = @transform_5, window_bounds = array<i64: 1, 32>}, {transform_indices = @transform_6, window_bounds = array<i64: 8, 32>}, {transform_indices = @transform_7, window_bounds = array<i64: 8, 32>}, {transform_indices = @transform_8, window_bounds = array<i64: 8, 32>}, {transform_indices = @transform_9, window_bounds = array<i64: 8, 32>}]} {
    %c0 = arith.constant 0 : index
    %c0_0 = arith.constant 0 : index
    %0 = vector.load %arg1[%c0, %c0_0] : memref<8x32xbf16, #tpu.memory_space<vmem>>, vector<8x32xbf16>
    %c0_1 = arith.constant 0 : index
    %c0_2 = arith.constant 0 : index
    %1 = vector.load %arg3[%c0_1, %c0_2] : memref<32x32xbf16, #tpu.memory_space<vmem>>, vector<32x32xbf16>
    %cst = arith.constant dense<0.000000e+00> : vector<8x32xf32>
    %2 = tpu.matmul %0, %1, %cst {dimension_numbers = #tpu.dot_dimension_numbers<[1], [0], [0], [1], [0, 0, 1, 1], [], []>} : vector<8x32xbf16>, vector<32x32xbf16>, vector<8x32xf32> -> vector<8x32xf32>
    %c0_3 = arith.constant 0 : index
    %c0_4 = arith.constant 0 : index
    %3 = vector.load %arg4[%c0_3, %c0_4] : memref<1x32xf32, #tpu.memory_space<vmem>>, vector<1x32xf32>
    %4 = vector.broadcast %3 : vector<1x32xf32> to vector<8x32xf32>
    %5 = arith.addf %2, %4 : vector<8x32xf32>
    %6 = arith.mulf %5, %5 : vector<8x32xf32>
    %cst_5 = arith.constant dense<0.000000e+00> : vector<8xf32>
    %7 = vector.multi_reduction <add>, %6, %cst_5 [1] : vector<8x32xf32> to vector<8xf32>
    %8 = vector.shape_cast %7 : vector<8xf32> to vector<8x1xf32>
    %cst_6 = arith.constant 1.000000e-24 : f32
    %9 = vector.broadcast %cst_6 : f32 to vector<8x1xf32>
    %10 = arith.maximumf %8, %9 : vector<8x1xf32>
    %11 = math.rsqrt %10 : vector<8x1xf32>
    %12 = vector.broadcast %11 : vector<8x1xf32> to vector<8x32xf32>
    %13 = arith.mulf %5, %12 : vector<8x32xf32>
    %c0_7 = arith.constant 0 : index
    %c0_8 = arith.constant 0 : index
    %14 = vector.load %arg2[%c0_7, %c0_8] : memref<8x32xbf16, #tpu.memory_space<vmem>>, vector<8x32xbf16>
    %c0_9 = arith.constant 0 : index
    %c0_10 = arith.constant 0 : index
    %15 = vector.load %arg5[%c0_9, %c0_10] : memref<32x32xbf16, #tpu.memory_space<vmem>>, vector<32x32xbf16>
    %cst_11 = arith.constant dense<0.000000e+00> : vector<8x32xf32>
    %16 = tpu.matmul %14, %15, %cst_11 {dimension_numbers = #tpu.dot_dimension_numbers<[1], [0], [0], [1], [0, 0, 1, 1], [], []>} : vector<8x32xbf16>, vector<32x32xbf16>, vector<8x32xf32> -> vector<8x32xf32>
    %c0_12 = arith.constant 0 : index
    %c0_13 = arith.constant 0 : index
    %17 = vector.load %arg6[%c0_12, %c0_13] : memref<1x32xf32, #tpu.memory_space<vmem>>, vector<1x32xf32>
    %18 = vector.broadcast %17 : vector<1x32xf32> to vector<8x32xf32>
    %19 = arith.addf %16, %18 : vector<8x32xf32>
    %20 = arith.mulf %19, %19 : vector<8x32xf32>
    %cst_14 = arith.constant dense<0.000000e+00> : vector<8xf32>
    %21 = vector.multi_reduction <add>, %20, %cst_14 [1] : vector<8x32xf32> to vector<8xf32>
    %22 = vector.shape_cast %21 : vector<8xf32> to vector<8x1xf32>
    %cst_15 = arith.constant 1.000000e-24 : f32
    %23 = vector.broadcast %cst_15 : f32 to vector<8x1xf32>
    %24 = arith.maximumf %22, %23 : vector<8x1xf32>
    %25 = math.rsqrt %24 : vector<8x1xf32>
    %26 = vector.broadcast %25 : vector<8x1xf32> to vector<8x32xf32>
    %27 = arith.mulf %19, %26 : vector<8x32xf32>
    %c0_16 = arith.constant 0 : index
    %c0_17 = arith.constant 0 : index
    %28 = vector.load %arg7[%c0_16, %c0_17] : memref<8x32xf32, #tpu.memory_space<vmem>>, vector<8x32xf32>
    tpu.vector_store %arg7[%c0_16, %c0_17], %13 {strides = array<i32>} : memref<8x32xf32, #tpu.memory_space<vmem>>, vector<8x32xf32>,
    %c0_18 = arith.constant 0 : index
    %c0_19 = arith.constant 0 : index
    %29 = vector.load %arg8[%c0_18, %c0_19] : memref<8x32xf32, #tpu.memory_space<vmem>>, vector<8x32xf32>
    tpu.vector_store %arg8[%c0_18, %c0_19], %27 {strides = array<i32>} : memref<8x32xf32, #tpu.memory_space<vmem>>, vector<8x32xf32>,
    %30 = arith.truncf %13 : vector<8x32xf32> to vector<8x32xbf16>
    %c0_20 = arith.constant 0 : index
    %c0_21 = arith.constant 0 : index
    %31 = vector.load %arg9[%c0_20, %c0_21] : memref<8x32xbf16, #tpu.memory_space<vmem>>, vector<8x32xbf16>
    tpu.vector_store %arg9[%c0_20, %c0_21], %30 {strides = array<i32>} : memref<8x32xbf16, #tpu.memory_space<vmem>>, vector<8x32xbf16>,
    %32 = arith.truncf %27 : vector<8x32xf32> to vector<8x32xbf16>
    %c0_22 = arith.constant 0 : index
    %c0_23 = arith.constant 0 : index
    %33 = vector.load %arg10[%c0_22, %c0_23] : memref<8x32xbf16, #tpu.memory_space<vmem>>, vector<8x32xbf16>
    tpu.vector_store %arg10[%c0_22, %c0_23], %32 {strides = array<i32>} : memref<8x32xbf16, #tpu.memory_space<vmem>>, vector<8x32xbf16>,
    return
  }
  func.func @transform_0(%arg0: i32) -> (i32, i32) {
    %c0_i32 = arith.constant 0 : i32
    %c0_i32_0 = arith.constant 0 : i32
    return %arg0, %c0_i32 : i32, i32
  }
  func.func @transform_1(%arg0: i32) -> (i32, i32) {
    %c0_i32 = arith.constant 0 : i32
    %c0_i32_0 = arith.constant 0 : i32
    return %arg0, %c0_i32 : i32, i32
  }
  func.func @transform_2(%arg0: i32) -> (i32, i32) {
    %c0_i32 = arith.constant 0 : i32
    %c0_i32_0 = arith.constant 0 : i32
    %c0_i32_1 = arith.constant 0 : i32
    return %c0_i32, %c0_i32_0 : i32, i32
  }
  func.func @transform_3(%arg0: i32) -> (i32, i32) {
    %c0_i32 = arith.constant 0 : i32
    %c0_i32_0 = arith.constant 0 : i32
    %c0_i32_1 = arith.constant 0 : i32
    return %c0_i32, %c0_i32_0 : i32, i32
  }
  func.func @transform_4(%arg0: i32) -> (i32, i32) {
    %c0_i32 = arith.constant 0 : i32
    %c0_i32_0 = arith.constant 0 : i32
    %c0_i32_1 = arith.constant 0 : i32
    return %c0_i32, %c0_i32_0 : i32, i32
  }
  func.func @transform_5(%arg0: i32) -> (i32, i32) {
    %c0_i32 = arith.constant 0 : i32
    %c0_i32_0 = arith.constant 0 : i32
    %c0_i32_1 = arith.constant 0 : i32
    return %c0_i32, %c0_i32_0 : i32, i32
  }
  func.func @transform_6(%arg0: i32) -> (i32, i32) {
    %c0_i32 = arith.constant 0 : i32
    %c0_i32_0 = arith.constant 0 : i32
    return %arg0, %c0_i32 : i32, i32
  }
  func.func @transform_7(%arg0: i32) -> (i32, i32) {
    %c0_i32 = arith.constant 0 : i32
    %c0_i32_0 = arith.constant 0 : i32
    return %arg0, %c0_i32 : i32, i32
  }
  func.func @transform_8(%arg0: i32) -> (i32, i32) {
    %c0_i32 = arith.constant 0 : i32
    %c0_i32_0 = arith.constant 0 : i32
    return %arg0, %c0_i32 : i32, i32
  }
  func.func @transform_9(%arg0: i32) -> (i32, i32) {
    %c0_i32 = arith.constant 0 : i32
    %c0_i32_0 = arith.constant 0 : i32
    return %arg0, %c0_i32 : i32, i32
  }
}

</mosaic_0001>

<llo_original>
// kernel: tpu_custom_call.1
$region0: #{tpu_custom_call.1}
  #allocation0 [shape = 'u32[]', space=smem, size = 0x4, offset = 0x4, fixed_abs, tag = 'smem constant byte address 0x4 - core index']
  #allocation1 [shape = 'u32[144,128]{1,0:T(1,128)}', space=vmem, size = 0x12000, scoped, tag = 'internal scratch']
  %s0 = inlined_call_operand.hbm [shape: bf16[8,32], index: 0, kind: input, shape index: {}]
  %s1 = inlined_call_operand.hbm [shape: bf16[8,32], index: 1, kind: input, shape index: {}]
  %s2 = inlined_call_operand.hbm [shape: bf16[32,32], index: 2, kind: input, shape index: {}]
  %s3 = inlined_call_operand.vmem [shape: f32[1,32], index: 3, kind: input, shape index: {}]
  %s4 = inlined_call_operand.hbm [shape: bf16[32,32], index: 4, kind: input, shape index: {}]
  %s5 = inlined_call_operand.vmem [shape: f32[1,32], index: 5, kind: input, shape index: {}]
  %s6 = inlined_call_operand.hbm [shape: f32[8,32], index: 6, kind: output, shape index: {0}]
  %s7 = inlined_call_operand.hbm [shape: f32[8,32], index: 7, kind: output, shape index: {1}]
  %s8 = inlined_call_operand.hbm [shape: bf16[8,32], index: 8, kind: output, shape index: {2}]
  %s9 = inlined_call_operand.hbm [shape: bf16[8,32], index: 9, kind: output, shape index: {3}]
  %10 = xla_tuple %s6, %s7, %s8, %s9
  %s11 = sld [smem:[#allocation0]]
  $region74: #{tpu_custom_call.1} parent=0
    _
  %s13 = ssub.s32 1, %s11
  %s14 = scalar_select 0, %s13, %s11
  $region1: #{tpu_custom_call.1} parent=0
    #allocation2 [shape = 'u8[2048]{0}', space=vmem, size = 0x800, scoped, tag = 'input window, operand 0, single buffered']
    #allocation3 [shape = 's32[1]{0}', space=sflag, size = 0x4, scoped, tag = 'scoped memory for tpu_custom_call.1']
    #allocation4 [shape = 's32[1]{0}', space=sflag, size = 0x4, scoped, tag = 'scoped memory for tpu_custom_call.1']
    #allocation5 [shape = 'u8[2048]{0}', space=vmem, size = 0x800, scoped, tag = 'input window, operand 1, single buffered']
    #allocation6 [shape = 's32[1]{0}', space=sflag, size = 0x4, scoped, tag = 'scoped memory for tpu_custom_call.1']
    #allocation7 [shape = 'u8[8192]{0}', space=vmem, size = 0x2000, scoped, tag = 'input window, operand 2, single buffered']
    #allocation8 [shape = 'u8[8192]{0}', space=vmem, size = 0x2000, scoped, tag = 'input window, operand 4, single buffered']
    #allocation9 [shape = 's32[1]{0}', space=sflag, size = 0x4, scoped, tag = 'scoped memory for tpu_custom_call.1']
    #allocation10 [shape = 'u8[4096]{0}', space=vmem, size = 0x1000, scoped, tag = 'output window, operand 0, single buffered']
    #allocation11 [shape = 'u8[4096]{0}', space=vmem, size = 0x1000, scoped, tag = 'output window, operand 1, single buffered']
    #allocation12 [shape = 's32[1]{0}', space=sflag, size = 0x4, scoped, tag = 'scoped memory for tpu_custom_call.1']
    #allocation13 [shape = 'u8[2048]{0}', space=vmem, size = 0x800, scoped, tag = 'output window, operand 2, single buffered']
    #allocation14 [shape = 'u8[2048]{0}', space=vmem, size = 0x800, scoped, tag = 'output window, operand 3, single buffered']
    #allocation15 [shape = 's32[1]{0}', space=sflag, size = 0x4, scoped, tag = 'scoped memory for tpu_custom_call.1']
    %15 = vsyncpa [#allocation3], 0
    %16 = vsyncpa [#allocation6], 0
    %17 = vsyncpa [#allocation9], 0
    %18 = vsyncpa [#allocation4], 0
    %19 = vsyncpa [#allocation12], 0
    %20 = vsyncpa [#allocation15], 0
    // Predicated region
    $region2: #{tpu_custom_call.1} parent=1 // pred_check
      _
    $region3: #{tpu_custom_call.1} parent=1 // pred_check_branch
      %22 = sbr.rel (0) target = $region5
    $region4: #{tpu_custom_call.1} parent=1 // pred_region
      %s24 = ssub.s32 64, 64
      %25 = vsyncadd [#allocation3], %s24
      %s27 = sshll.u32 [#allocation2], 4
      %s28 = int_to_ptr.vmem [resolvable:$true] %s27
      %30 = dma.hbm_to_vmem [thread:$0]  %s0, 64, %s28, [#allocation3]
    $region5: #{tpu_custom_call.1} parent=1 // pred_fallthru
      _
    // Predicated region
    $region6: #{tpu_custom_call.1} parent=1 // pred_check
      _
    $region7: #{tpu_custom_call.1} parent=1 // pred_check_branch
      %32 = sbr.rel (0) target = $region9
    $region8: #{tpu_custom_call.1} parent=1 // pred_region
      %s34 = ssub.s32 64, 64
      %35 = vsyncadd [#allocation6], %s34
      %s37 = sshll.u32 [#allocation5], 4
      %s38 = int_to_ptr.vmem [resolvable:$true] %s37
      %40 = dma.hbm_to_vmem [thread:$0]  %s1, 64, %s38, [#allocation6]
    $region9: #{tpu_custom_call.1} parent=1 // pred_fallthru
      _
    // Predicated region
    $region10: #{tpu_custom_call.1} parent=1 // pred_check
      _
    $region11: #{tpu_custom_call.1} parent=1 // pred_check_branch
      %42 = sbr.rel (0) target = $region13
    $region12: #{tpu_custom_call.1} parent=1 // pred_region
      %s44 = ssub.s32 256, 256
      %45 = vsyncadd [#allocation6], %s44
      %s46 = sshll.u32 [#allocation7], 4
      %s47 = int_to_ptr.vmem [resolvable:$true] %s46
      %52 = dma.hbm_to_vmem [thread:$0]  %s2, 256, %s47, [#allocation6], 64, 64, 4
    $region13: #{tpu_custom_call.1} parent=1 // pred_fallthru
      _
    // Predicated region
    $region14: #{tpu_custom_call.1} parent=1 // pred_check
      _
    $region15: #{tpu_custom_call.1} parent=1 // pred_check_branch
      %54 = sbr.rel (0) target = $region17
    $region16: #{tpu_custom_call.1} parent=1 // pred_region
      _
    $region17: #{tpu_custom_call.1} parent=1 // pred_fallthru
      _
    // Predicated region
    $region18: #{tpu_custom_call.1} parent=1 // pred_check
      _
    $region19: #{tpu_custom_call.1} parent=1 // pred_check_branch
      %56 = sbr.rel (0) target = $region21
    $region20: #{tpu_custom_call.1} parent=1 // pred_region
      %s58 = ssub.s32 256, 256
      %59 = vsyncadd [#allocation9], %s58
      %s60 = sshll.u32 [#allocation8], 4
      %s61 = int_to_ptr.vmem [resolvable:$true] %s60
      %66 = dma.hbm_to_vmem [thread:$0]  %s4, 256, %s61, [#allocation9], 64, 64, 4
    $region21: #{tpu_custom_call.1} parent=1 // pred_fallthru
      _
    // Predicated region
    $region22: #{tpu_custom_call.1} parent=1 // pred_check
      _
    $region23: #{tpu_custom_call.1} parent=1 // pred_check_branch
      %68 = sbr.rel (0) target = $region25
    $region24: #{tpu_custom_call.1} parent=1 // pred_region
      _
    $region25: #{tpu_custom_call.1} parent=1 // pred_fallthru
      _
    // Predicated region
    $region26: #{tpu_custom_call.1} parent=1 // pred_check
      _
    $region27: #{tpu_custom_call.1} parent=1 // pred_check_branch
      %70 = sbr.rel (0) target = $region29
    $region28: #{tpu_custom_call.1} parent=1 // pred_region
      %71 = dma.done [#allocation3], 64
    $region29: #{tpu_custom_call.1} parent=1 // pred_fallthru
      _
    // Predicated region
    $region30: #{tpu_custom_call.1} parent=1 // pred_check
      _
    $region31: #{tpu_custom_call.1} parent=1 // pred_check_branch
      %73 = sbr.rel (0) target = $region33
    $region32: #{tpu_custom_call.1} parent=1 // pred_region
      %74 = dma.done [#allocation6], 64
    $region33: #{tpu_custom_call.1} parent=1 // pred_fallthru
      _
    // Predicated region
    $region34: #{tpu_custom_call.1} parent=1 // pred_check
      _
    $region35: #{tpu_custom_call.1} parent=1 // pred_check_branch
      %76 = sbr.rel (0) target = $region37
    $region36: #{tpu_custom_call.1} parent=1 // pred_region
      %77 = dma.done [#allocation6], 256
    $region37: #{tpu_custom_call.1} parent=1 // pred_fallthru
      _
    // Predicated region
    $region38: #{tpu_custom_call.1} parent=1 // pred_check
      _
    $region39: #{tpu_custom_call.1} parent=1 // pred_check_branch
      %79 = sbr.rel (0) target = $region41
    $region40: #{tpu_custom_call.1} parent=1 // pred_region
      %80 = dma.done [#allocation9], 256
    $region41: #{tpu_custom_call.1} parent=1 // pred_fallthru
      _
    %v82 = vld [vmem:[#allocation2] sm:$0xf]
    %v83 = vld [vmem:[#allocation7] sm:$0xf]
    %v84 = vld [vmem:[#allocation7 + $0x4] sm:$0xf]
    %v85 = vld [vmem:[#allocation7 + $0x8] sm:$0xf]
    %v86 = vld [vmem:[#allocation7 + $0xc] sm:$0xf]
    %v87 = vld [vmem:[%s3] sm:$0x1]
    %v89 = vlaneseq
    %v90 = vshrl.u32 %v89, 7
    %v91 = vsub.s32 0, %v90
    %v92 = vrot.slane %v87, %v91
    %v98 = vunpack.c.l.b16 %v83
    %v99 = vunpack.c.l.b16 %v84
    %v100 = vunpack.c.l.b16 %v85
    %v101 = vunpack.c.l.b16 %v86
    %v102 = vpack.c.b16 %v99, %v98
    %v103 = vpack.c.b16 %v101, %v100
    %vm106 = vcmask 261120
    %v108 = vsel %vm106, %v82, 0
    %110 = vmatprep.subr.bf16.mxu0 0
    %111 = vmatpush1.bf16.msra.mxu0 %v102
    %112 = vmatprep.subr.bf16.mxu0 0
    %113 = vmatpush1.bf16.msra.mxu0 %v103
    %114 = vmatprep.subr.bf16.mxu0 0
    %115 = vmatpush1.bf16.msra.mxu0 0
    %116 = vmatprep.subr.bf16.mxu0 0
    %117 = vmatpush1.bf16.msra.mxu0 0
    %118 = vmatprep.subr.bf16.mxu0 0
    %119 = vmatpush1.bf16.msra.mxu0 0
    %120 = vmatprep.subr.bf16.mxu0 0
    %121 = vmatpush1.bf16.msra.mxu0 0
    %122 = vmatprep.subr.bf16.mxu0 0
    %123 = vmatpush1.bf16.msra.mxu0 0
    %124 = vmatprep.subr.bf16.mxu0 0
    %125 = vmatpush1.bf16.msra.mxu0 0
    %126 = vmatprep.subr.bf16.mxu0 0
    %127 = vmatpush1.bf16.msra.mxu0 0
    %128 = vmatprep.subr.bf16.mxu0 0
    %129 = vmatpush1.bf16.msra.mxu0 0
    %130 = vmatprep.subr.bf16.mxu0 0
    %131 = vmatpush1.bf16.msra.mxu0 0
    %132 = vmatprep.subr.bf16.mxu0 0
    %133 = vmatpush1.bf16.msra.mxu0 0
    %134 = vmatprep.subr.bf16.mxu0 0
    %135 = vmatpush1.bf16.msra.mxu0 0
    %136 = vmatprep.subr.bf16.mxu0 0
    %137 = vmatpush1.bf16.msra.mxu0 0
    %138 = vmatprep.subr.bf16.mxu0 0
    %139 = vmatpush1.bf16.msra.mxu0 0
    %140 = vmatprep.subr.bf16.mxu0 0
    %141 = vmatpush1.bf16.msra.mxu0 0
    %142 = vmatprep.mubr.bf16.mxu0 0
    %143 = vmatmul.mubr.bf16.gmra.mrb[0].mxu0 %v108
    %v144 = vpop.f32.mrb[0].mxu0
    %v145 = vadd.f32 %v92, %v144
    %v146 = vpop.f32.mrb[0].mxu0
    %v147 = vpop.f32.mrb[0].mxu0
    %v148 = vpop.f32.mrb[0].mxu0
    %149 = vdwg.mxu0
    %v150 = vmul.f32 %v145, %v145
    %v151 = vsel %vm106, %v150, 0.0
    %152 = vadd.xlane.f32.xlu0 %v151
    %v153 = vpop.xlane.xlu0 %152
    %v154 = vmax.f32 %v153, 1e-24
    %v155 = vrsqrt.pop %v154
    %v156 = vmul.f32 %v145, %v155
    %v157 = vld [vmem:[#allocation5] sm:$0xf]
    %v158 = vld [vmem:[#allocation8] sm:$0xf]
    %v159 = vld [vmem:[#allocation8 + $0x4] sm:$0xf]
    %v160 = vld [vmem:[#allocation8 + $0x8] sm:$0xf]
    %v161 = vld [vmem:[#allocation8 + $0xc] sm:$0xf]
    %v162 = vld [vmem:[%s5] sm:$0x1]
    %v164 = vlaneseq
    %v165 = vshrl.u32 %v164, 7
    %v166 = vsub.s32 0, %v165
    %v167 = vrot.slane %v162, %v166
    %v173 = vunpack.c.l.b16 %v158
    %v174 = vunpack.c.l.b16 %v159
    %v175 = vunpack.c.l.b16 %v160
    %v176 = vunpack.c.l.b16 %v161
    %v177 = vpack.c.b16 %v174, %v173
    %v178 = vpack.c.b16 %v176, %v175
    %v182 = vsel %vm106, %v157, 0
    %184 = vmatprep.subr.bf16.mxu0 0
    %185 = vmatpush1.bf16.msra.mxu0 %v177
    %186 = vmatprep.subr.bf16.mxu0 0
    %187 = vmatpush1.bf16.msra.mxu0 %v178
    %188 = vmatprep.subr.bf16.mxu0 0
    %189 = vmatpush1.bf16.msra.mxu0 0
    %190 = vmatprep.subr.bf16.mxu0 0
    %191 = vmatpush1.bf16.msra.mxu0 0
    %192 = vmatprep.subr.bf16.mxu0 0
    %193 = vmatpush1.bf16.msra.mxu0 0
    %194 = vmatprep.subr.bf16.mxu0 0
    %195 = vmatpush1.bf16.msra.mxu0 0
    %196 = vmatprep.subr.bf16.mxu0 0
    %197 = vmatpush1.bf16.msra.mxu0 0
    %198 = vmatprep.subr.bf16.mxu0 0
    %199 = vmatpush1.bf16.msra.mxu0 0
    %200 = vmatprep.subr.bf16.mxu0 0
    %201 = vmatpush1.bf16.msra.mxu0 0
    %202 = vmatprep.subr.bf16.mxu0 0
    %203 = vmatpush1.bf16.msra.mxu0 0
    %204 = vmatprep.subr.bf16.mxu0 0
    %205 = vmatpush1.bf16.msra.mxu0 0
    %206 = vmatprep.subr.bf16.mxu0 0
    %207 = vmatpush1.bf16.msra.mxu0 0
    %208 = vmatprep.subr.bf16.mxu0 0
    %209 = vmatpush1.bf16.msra.mxu0 0
    %210 = vmatprep.subr.bf16.mxu0 0
    %211 = vmatpush1.bf16.msra.mxu0 0
    %212 = vmatprep.subr.bf16.mxu0 0
    %213 = vmatpush1.bf16.msra.mxu0 0
    %214 = vmatprep.subr.bf16.mxu0 0
    %215 = vmatpush1.bf16.msra.mxu0 0
    %216 = vmatprep.mubr.bf16.mxu0 0
    %217 = vmatmul.mubr.bf16.gmra.mrb[0].mxu0 %v182
    %v218 = vpop.f32.mrb[0].mxu0
    %v219 = vadd.f32 %v167, %v218
    %v220 = vpop.f32.mrb[0].mxu0
    %v221 = vpop.f32.mrb[0].mxu0
    %v222 = vpop.f32.mrb[0].mxu0
    %223 = vdwg.mxu0
    %v224 = vmul.f32 %v219, %v219
    %v225 = vsel %vm106, %v224, 0.0
    %226 = vadd.xlane.f32.xlu0 %v225
    %v227 = vpop.xlane.xlu0 %226
    %v228 = vmax.f32 %v227, 1e-24
    %v229 = vrsqrt.pop %v228
    %v230 = vmul.f32 %v219, %v229
    %231 = vst.msk [vmem:[#allocation10] sm:$0xff] %vm106, %v156
    %232 = vst.msk [vmem:[#allocation11] sm:$0xff] %vm106, %v230
    %v233 = vpack.c.bf16 %v156, %v156
    %vm234 = vcmask 257024
    %235 = vst.msk [vmem:[#allocation13] sm:$0xf] %vm234, %v233
    %v236 = vpack.c.bf16 %v230, %v230
    %237 = vst.msk [vmem:[#allocation14] sm:$0xf] %vm234, %v236
    // Predicated region
    $region42: #{tpu_custom_call.1} parent=1 // pred_check
      _
    $region43: #{tpu_custom_call.1} parent=1 // pred_check_branch
      %239 = sbr.rel (0) target = $region45
    $region44: #{tpu_custom_call.1} parent=1 // pred_region
      %s241 = ssub.s32 128, 128
      %242 = vsyncadd [#allocation4], %s241
      %s244 = sshll.u32 [#allocation10], 4
      %s245 = int_to_ptr.vmem [resolvable:$true] %s244
      %247 = dma.vmem_to_hbm [thread:$0]  %s245, 128, %s6, [#allocation4]
    $region45: #{tpu_custom_call.1} parent=1 // pred_fallthru
      _
    // Predicated region
    $region46: #{tpu_custom_call.1} parent=1 // pred_check
      _
    $region47: #{tpu_custom_call.1} parent=1 // pred_check_branch
      %249 = sbr.rel (0) target = $region49
    $region48: #{tpu_custom_call.1} parent=1 // pred_region
      %s251 = ssub.s32 128, 128
      %252 = vsyncadd [#allocation12], %s251
      %s254 = sshll.u32 [#allocation11], 4
      %s255 = int_to_ptr.vmem [resolvable:$true] %s254
      %257 = dma.vmem_to_hbm [thread:$0]  %s255, 128, %s7, [#allocation12]
    $region49: #{tpu_custom_call.1} parent=1 // pred_fallthru
      _
    // Predicated region
    $region50: #{tpu_custom_call.1} parent=1 // pred_check
      _
    $region51: #{tpu_custom_call.1} parent=1 // pred_check_branch
      %259 = sbr.rel (0) target = $region53
    $region52: #{tpu_custom_call.1} parent=1 // pred_region
      %s261 = ssub.s32 64, 64
      %262 = vsyncadd [#allocation12], %s261
      %s264 = sshll.u32 [#allocation13], 4
      %s265 = int_to_ptr.vmem [resolvable:$true] %s264
      %267 = dma.vmem_to_hbm [thread:$0]  %s265, 64, %s8, [#allocation12]
    $region53: #{tpu_custom_call.1} parent=1 // pred_fallthru
      _
    // Predicated region
    $region54: #{tpu_custom_call.1} parent=1 // pred_check
      _
    $region55: #{tpu_custom_call.1} parent=1 // pred_check_branch
      %269 = sbr.rel (0) target = $region57
    $region56: #{tpu_custom_call.1} parent=1 // pred_region
      %s271 = ssub.s32 64, 64
      %272 = vsyncadd [#allocation15], %s271
      %s274 = sshll.u32 [#allocation14], 4
      %s275 = int_to_ptr.vmem [resolvable:$true] %s274
      %277 = dma.vmem_to_hbm [thread:$0]  %s275, 64, %s9, [#allocation15]
    $region57: #{tpu_custom_call.1} parent=1 // pred_fallthru
      _
    // Predicated region
    $region58: #{tpu_custom_call.1} parent=1 // pred_check
      _
    $region59: #{tpu_custom_call.1} parent=1 // pred_check_branch
      %279 = sbr.rel (0) target = $region61
    $region60: #{tpu_custom_call.1} parent=1 // pred_region
      %280 = dma.done [#allocation4], 128
    $region61: #{tpu_custom_call.1} parent=1 // pred_fallthru
      _
    // Predicated region
    $region62: #{tpu_custom_call.1} parent=1 // pred_check
      _
    $region63: #{tpu_custom_call.1} parent=1 // pred_check_branch
      %282 = sbr.rel (0) target = $region65
    $region64: #{tpu_custom_call.1} parent=1 // pred_region
      %283 = dma.done [#allocation12], 128
    $region65: #{tpu_custom_call.1} parent=1 // pred_fallthru
      _
    // Predicated region
    $region66: #{tpu_custom_call.1} parent=1 // pred_check
      _
    $region67: #{tpu_custom_call.1} parent=1 // pred_check_branch
      %285 = sbr.rel (0) target = $region69
    $region68: #{tpu_custom_call.1} parent=1 // pred_region
      %286 = dma.done [#allocation12], 64
    $region69: #{tpu_custom_call.1} parent=1 // pred_fallthru
      _
    // Predicated region
    $region70: #{tpu_custom_call.1} parent=1 // pred_check
      _
    $region71: #{tpu_custom_call.1} parent=1 // pred_check_branch
      %288 = sbr.rel (0) target = $region73
    $region72: #{tpu_custom_call.1} parent=1 // pred_region
      %289 = dma.done [#allocation15], 64
    $region73: #{tpu_custom_call.1} parent=1 // pred_fallthru
      _
    %290 = vsyncpa [#allocation3], 1
    %291 = vsyncpa [#allocation6], 1
    %292 = vsyncpa [#allocation9], 1
    %293 = vsyncpa [#allocation4], 1
    %294 = vsyncpa [#allocation12], 1
    %295 = vsyncpa [#allocation15], 1

// kernel: tpu_custom_call.1
$region0: #{tpu_custom_call.1}
  #allocation0 [shape = 'u32[]', space=smem, size = 0x4, offset = 0x4, fixed_abs, tag = 'smem constant byte address 0x4 - core index']
  #allocation1 [shape = 'u32[144,128]{1,0:T(1,128)}', space=vmem, size = 0x12000, scoped, tag = 'internal scratch']
  %s0 = inlined_call_operand.hbm [shape: bf16[8,32], index: 0, kind: input, shape index: {}]
  %s1 = inlined_call_operand.hbm [shape: bf16[8,32], index: 1, kind: input, shape index: {}]
  %s2 = inlined_call_operand.hbm [shape: bf16[32,32], index: 2, kind: input, shape index: {}]
  %s3 = inlined_call_operand.vmem [shape: f32[1,32], index: 3, kind: input, shape index: {}]
  %s4 = inlined_call_operand.hbm [shape: bf16[32,32], index: 4, kind: input, shape index: {}]
  %s5 = inlined_call_operand.vmem [shape: f32[1,32], index: 5, kind: input, shape index: {}]
  %s6 = inlined_call_operand.hbm [shape: f32[8,32], index: 6, kind: output, shape index: {0}]
  %s7 = inlined_call_operand.hbm [shape: f32[8,32], index: 7, kind: output, shape index: {1}]
  %s8 = inlined_call_operand.hbm [shape: bf16[8,32], index: 8, kind: output, shape index: {2}]
  %s9 = inlined_call_operand.hbm [shape: bf16[8,32], index: 9, kind: output, shape index: {3}]
  %10 = xla_tuple %s6, %s7, %s8, %s9
  %s11 = sld [smem:[#allocation0]]
  $region74: #{tpu_custom_call.1} parent=0
    _
  %s13 = ssub.s32 1, %s11
  %s14 = scalar_select 0, %s13, %s11
  $region1: #{tpu_custom_call.1} parent=0
    #allocation2 [shape = 'u8[2048]{0}', space=vmem, size = 0x800, scoped, tag = 'input window, operand 0, single buffered']
    #allocation3 [shape = 's32[1]{0}', space=sflag, size = 0x4, scoped, tag = 'scoped memory for tpu_custom_call.1']
    #allocation4 [shape = 's32[1]{0}', space=sflag, size = 0x4, scoped, tag = 'scoped memory for tpu_custom_call.1']
    #allocation5 [shape = 'u8[2048]{0}', space=vmem, size = 0x800, scoped, tag = 'input window, operand 1, single buffered']
    #allocation6 [shape = 's32[1]{0}', space=sflag, size = 0x4, scoped, tag = 'scoped memory for tpu_custom_call.1']
    #allocation7 [shape = 'u8[8192]{0}', space=vmem, size = 0x2000, scoped, tag = 'input window, operand 2, single buffered']
    #allocation8 [shape = 'u8[8192]{0}', space=vmem, size = 0x2000, scoped, tag = 'input window, operand 4, single buffered']
    #allocation9 [shape = 's32[1]{0}', space=sflag, size = 0x4, scoped, tag = 'scoped memory for tpu_custom_call.1']
    #allocation10 [shape = 'u8[4096]{0}', space=vmem, size = 0x1000, scoped, tag = 'output window, operand 0, single buffered']
    #allocation11 [shape = 'u8[4096]{0}', space=vmem, size = 0x1000, scoped, tag = 'output window, operand 1, single buffered']
    #allocation12 [shape = 's32[1]{0}', space=sflag, size = 0x4, scoped, tag = 'scoped memory for tpu_custom_call.1']
    #allocation13 [shape = 'u8[2048]{0}', space=vmem, size = 0x800, scoped, tag = 'output window, operand 2, single buffered']
    #allocation14 [shape = 'u8[2048]{0}', space=vmem, size = 0x800, scoped, tag = 'output window, operand 3, single buffered']
    #allocation15 [shape = 's32[1]{0}', space=sflag, size = 0x4, scoped, tag = 'scoped memory for tpu_custom_call.1']
    %15 = vsyncpa [#allocation3], 0
    %16 = vsyncpa [#allocation6], 0
    %17 = vsyncpa [#allocation9], 0
    %18 = vsyncpa [#allocation4], 0
    %19 = vsyncpa [#allocation12], 0
    %20 = vsyncpa [#allocation15], 0
    // Predicated region
    $region2: #{tpu_custom_call.1} parent=1 // pred_check
      _
    $region3: #{tpu_custom_call.1} parent=1 // pred_check_branch
      %22 = sbr.rel (0) target = $region5
    $region4: #{tpu_custom_call.1} parent=1 // pred_region
      %s24 = ssub.s32 64, 64
      %25 = vsyncadd [#allocation3], %s24
      %s27 = sshll.u32 [#allocation2], 4
      %s28 = int_to_ptr.vmem [resolvable:$true] %s27
      %30 = dma.hbm_to_vmem [thread:$0]  %s0, 64, %s28, [#allocation3]
    $region5: #{tpu_custom_call.1} parent=1 // pred_fallthru
      _
    // Predicated region
    $region6: #{tpu_custom_call.1} parent=1 // pred_check
      _
    $region7: #{tpu_custom_call.1} parent=1 // pred_check_branch
      %32 = sbr.rel (0) target = $region9
    $region8: #{tpu_custom_call.1} parent=1 // pred_region
      %s34 = ssub.s32 64, 64
      %35 = vsyncadd [#allocation6], %s34
      %s37 = sshll.u32 [#allocation5], 4
      %s38 = int_to_ptr.vmem [resolvable:$true] %s37
      %40 = dma.hbm_to_vmem [thread:$0]  %s1, 64, %s38, [#allocation6]
    $region9: #{tpu_custom_call.1} parent=1 // pred_fallthru
      _
    // Predicated region
    $region10: #{tpu_custom_call.1} parent=1 // pred_check
      _
    $region11: #{tpu_custom_call.1} parent=1 // pred_check_branch
      %42 = sbr.rel (0) target = $region13
    $region12: #{tpu_custom_call.1} parent=1 // pred_region
      %s44 = ssub.s32 256, 256
      %45 = vsyncadd [#allocation6], %s44
      %s46 = sshll.u32 [#allocation7], 4
      %s47 = int_to_ptr.vmem [resolvable:$true] %s46
      %52 = dma.hbm_to_vmem [thread:$0]  %s2, 256, %s47, [#allocation6], 64, 64, 4
    $region13: #{tpu_custom_call.1} parent=1 // pred_fallthru
      _
    // Predicated region
    $region14: #{tpu_custom_call.1} parent=1 // pred_check
      _
    $region15: #{tpu_custom_call.1} parent=1 // pred_check_branch
      %54 = sbr.rel (0) target = $region17
    $region16: #{tpu_custom_call.1} parent=1 // pred_region
      _
    $region17: #{tpu_custom_call.1} parent=1 // pred_fallthru
      _
    // Predicated region
    $region18: #{tpu_custom_call.1} parent=1 // pred_check
      _
    $region19: #{tpu_custom_call.1} parent=1 // pred_check_branch
      %56 = sbr.rel (0) target = $region21
    $region20: #{tpu_custom_call.1} parent=1 // pred_region
      %s58 = ssub.s32 256, 256
      %59 = vsyncadd [#allocation9], %s58
      %s60 = sshll.u32 [#allocation8], 4
      %s61 = int_to_ptr.vmem [resolvable:$true] %s60
      %66 = dma.hbm_to_vmem [thread:$0]  %s4, 256, %s61, [#allocation9], 64, 64, 4
    $region21: #{tpu_custom_call.1} parent=1 // pred_fallthru
      _
    // Predicated region
    $region22: #{tpu_custom_call.1} parent=1 // pred_check
      _
    $region23: #{tpu_custom_call.1} parent=1 // pred_check_branch
      %68 = sbr.rel (0) target = $region25
    $region24: #{tpu_custom_call.1} parent=1 // pred_region
      _
    $region25: #{tpu_custom_call.1} parent=1 // pred_fallthru
      _
    // Predicated region
    $region26: #{tpu_custom_call.1} parent=1 // pred_check
      _
    $region27: #{tpu_custom_call.1} parent=1 // pred_check_branch
      %70 = sbr.rel (0) target = $region29
    $region28: #{tpu_custom_call.1} parent=1 // pred_region
      %71 = dma.done [#allocation3], 64
    $region29: #{tpu_custom_call.1} parent=1 // pred_fallthru
      _
    // Predicated region
    $region30: #{tpu_custom_call.1} parent=1 // pred_check
      _
    $region31: #{tpu_custom_call.1} parent=1 // pred_check_branch
      %73 = sbr.rel (0) target = $region33
    $region32: #{tpu_custom_call.1} parent=1 // pred_region
      %74 = dma.done [#allocation6], 64
    $region33: #{tpu_custom_call.1} parent=1 // pred_fallthru
      _
    // Predicated region
    $region34: #{tpu_custom_call.1} parent=1 // pred_check
      _
    $region35: #{tpu_custom_call.1} parent=1 // pred_check_branch
      %76 = sbr.rel (0) target = $region37
    $region36: #{tpu_custom_call.1} parent=1 // pred_region
      %77 = dma.done [#allocation6], 256
    $region37: #{tpu_custom_call.1} parent=1 // pred_fallthru
      _
    // Predicated region
    $region38: #{tpu_custom_call.1} parent=1 // pred_check
      _
    $region39: #{tpu_custom_call.1} parent=1 // pred_check_branch
      %79 = sbr.rel (0) target = $region41
    $region40: #{tpu_custom_call.1} parent=1 // pred_region
      %80 = dma.done [#allocation9], 256
    $region41: #{tpu_custom_call.1} parent=1 // pred_fallthru
      _
    %v82 = vld [vmem:[#allocation2] sm:$0xf]
    %v83 = vld [vmem:[#allocation7] sm:$0xf]
    %v84 = vld [vmem:[#allocation7 + $0x4] sm:$0xf]
    %v85 = vld [vmem:[#allocation7 + $0x8] sm:$0xf]
    %v86 = vld [vmem:[#allocation7 + $0xc] sm:$0xf]
    %v87 = vld [vmem:[%s3] sm:$0x1]
    %v89 = vlaneseq
    %v90 = vshrl.u32 %v89, 7
    %v91 = vsub.s32 0, %v90
    %v92 = vrot.slane %v87, %v91
    %v98 = vunpack.c.l.b16 %v83
    %v99 = vunpack.c.l.b16 %v84
    %v100 = vunpack.c.l.b16 %v85
    %v101 = vunpack.c.l.b16 %v86
    %v102 = vpack.c.b16 %v99, %v98
    %v103 = vpack.c.b16 %v101, %v100
    %vm106 = vcmask 261120
    %v108 = vsel %vm106, %v82, 0
    %110 = vmatprep.subr.bf16.mxu0 0
    %111 = vmatpush1.bf16.msra.mxu0 %v102
    %112 = vmatprep.subr.bf16.mxu0 0
    %113 = vmatpush1.bf16.msra.mxu0 %v103
    %114 = vmatprep.subr.bf16.mxu0 0
    %115 = vmatpush1.bf16.msra.mxu0 0
    %116 = vmatprep.subr.bf16.mxu0 0
    %117 = vmatpush1.bf16.msra.mxu0 0
    %118 = vmatprep.subr.bf16.mxu0 0
    %119 = vmatpush1.bf16.msra.mxu0 0
    %120 = vmatprep.subr.bf16.mxu0 0
    %121 = vmatpush1.bf16.msra.mxu0 0
    %122 = vmatprep.subr.bf16.mxu0 0
    %123 = vmatpush1.bf16.msra.mxu0 0
    %124 = vmatprep.subr.bf16.mxu0 0
    %125 = vmatpush1.bf16.msra.mxu0 0
    %126 = vmatprep.subr.bf16.mxu0 0
    %127 = vmatpush1.bf16.msra.mxu0 0
    %128 = vmatprep.subr.bf16.mxu0 0
    %129 = vmatpush1.bf16.msra.mxu0 0
    %130 = vmatprep.subr.bf16.mxu0 0
    %131 = vmatpush1.bf16.msra.mxu0 0
    %132 = vmatprep.subr.bf16.mxu0 0
    %133 = vmatpush1.bf16.msra.mxu0 0
    %134 = vmatprep.subr.bf16.mxu0 0
    %135 = vmatpush1.bf16.msra.mxu0 0
    %136 = vmatprep.subr.bf16.mxu0 0
    %137 = vmatpush1.bf16.msra.mxu0 0
    %138 = vmatprep.subr.bf16.mxu0 0
    %139 = vmatpush1.bf16.msra.mxu0 0
    %140 = vmatprep.subr.bf16.mxu0 0
    %141 = vmatpush1.bf16.msra.mxu0 0
    %142 = vmatprep.mubr.bf16.mxu0 0
    %143 = vmatmul.mubr.bf16.gmra.mrb[0].mxu0 %v108
    %v144 = vpop.f32.mrb[0].mxu0
    %v145 = vadd.f32 %v92, %v144
    %v146 = vpop.f32.mrb[0].mxu0
    %v147 = vpop.f32.mrb[0].mxu0
    %v148 = vpop.f32.mrb[0].mxu0
    %149 = vdwg.mxu0
    %v150 = vmul.f32 %v145, %v145
    %v151 = vsel %vm106, %v150, 0.0
    %152 = vadd.xlane.f32.xlu0 %v151
    %v153 = vpop.xlane.xlu0 %152
    %v154 = vmax.f32 %v153, 1e-24
    %v155 = vrsqrt.pop %v154
    %v156 = vmul.f32 %v145, %v155
    %v157 = vld [vmem:[#allocation5] sm:$0xf]
    %v158 = vld [vmem:[#allocation8] sm:$0xf]
    %v159 = vld [vmem:[#allocation8 + $0x4] sm:$0xf]
    %v160 = vld [vmem:[#allocation8 + $0x8] sm:$0xf]
    %v161 = vld [vmem:[#allocation8 + $0xc] sm:$0xf]
    %v162 = vld [vmem:[%s5] sm:$0x1]
    %v164 = vlaneseq
    %v165 = vshrl.u32 %v164, 7
    %v166 = vsub.s32 0, %v165
    %v167 = vrot.slane %v162, %v166
    %v173 = vunpack.c.l.b16 %v158
    %v174 = vunpack.c.l.b16 %v159
    %v175 = vunpack.c.l.b16 %v160
    %v176 = vunpack.c.l.b16 %v161
    %v177 = vpack.c.b16 %v174, %v173
    %v178 = vpack.c.b16 %v176, %v175
    %v182 = vsel %vm106, %v157, 0
    %184 = vmatprep.subr.bf16.mxu0 0
    %185 = vmatpush1.bf16.msra.mxu0 %v177
    %186 = vmatprep.subr.bf16.mxu0 0
    %187 = vmatpush1.bf16.msra.mxu0 %v178
    %188 = vmatprep.subr.bf16.mxu0 0
    %189 = vmatpush1.bf16.msra.mxu0 0
    %190 = vmatprep.subr.bf16.mxu0 0
    %191 = vmatpush1.bf16.msra.mxu0 0
    %192 = vmatprep.subr.bf16.mxu0 0
    %193 = vmatpush1.bf16.msra.mxu0 0
    %194 = vmatprep.subr.bf16.mxu0 0
    %195 = vmatpush1.bf16.msra.mxu0 0
    %196 = vmatprep.subr.bf16.mxu0 0
    %197 = vmatpush1.bf16.msra.mxu0 0
    %198 = vmatprep.subr.bf16.mxu0 0
    %199 = vmatpush1.bf16.msra.mxu0 0
    %200 = vmatprep.subr.bf16.mxu0 0
    %201 = vmatpush1.bf16.msra.mxu0 0
    %202 = vmatprep.subr.bf16.mxu0 0
    %203 = vmatpush1.bf16.msra.mxu0 0
    %204 = vmatprep.subr.bf16.mxu0 0
    %205 = vmatpush1.bf16.msra.mxu0 0
    %206 = vmatprep.subr.bf16.mxu0 0
    %207 = vmatpush1.bf16.msra.mxu0 0
    %208 = vmatprep.subr.bf16.mxu0 0
    %209 = vmatpush1.bf16.msra.mxu0 0
    %210 = vmatprep.subr.bf16.mxu0 0
    %211 = vmatpush1.bf16.msra.mxu0 0
    %212 = vmatprep.subr.bf16.mxu0 0
    %213 = vmatpush1.bf16.msra.mxu0 0
    %214 = vmatprep.subr.bf16.mxu0 0
    %215 = vmatpush1.bf16.msra.mxu0 0
    %216 = vmatprep.mubr.bf16.mxu0 0
    %217 = vmatmul.mubr.bf16.gmra.mrb[0].mxu0 %v182
    %v218 = vpop.f32.mrb[0].mxu0
    %v219 = vadd.f32 %v167, %v218
    %v220 = vpop.f32.mrb[0].mxu0
    %v221 = vpop.f32.mrb[0].mxu0
    %v222 = vpop.f32.mrb[0].mxu0
    %223 = vdwg.mxu0
    %v224 = vmul.f32 %v219, %v219
    %v225 = vsel %vm106, %v224, 0.0
    %226 = vadd.xlane.f32.xlu0 %v225
    %v227 = vpop.xlane.xlu0 %226
    %v228 = vmax.f32 %v227, 1e-24
    %v229 = vrsqrt.pop %v228
    %v230 = vmul.f32 %v219, %v229
    %231 = vst.msk [vmem:[#allocation10] sm:$0xff] %vm106, %v156
    %232 = vst.msk [vmem:[#allocation11] sm:$0xff] %vm106, %v230
    %v233 = vpack.c.bf16 %v156, %v156
    %vm234 = vcmask 257024
    %235 = vst.msk [vmem:[#allocation13] sm:$0xf] %vm234, %v233
    %v236 = vpack.c.bf16 %v230, %v230
    %237 = vst.msk [vmem:[#allocation14] sm:$0xf] %vm234, %v236
    // Predicated region
    $region42: #{tpu_custom_call.1} parent=1 // pred_check
      _
    $region43: #{tpu_custom_call.1} parent=1 // pred_check_branch
      %239 = sbr.rel (0) target = $region45
    $region44: #{tpu_custom_call.1} parent=1 // pred_region
      %s241 = ssub.s32 128, 128
      %242 = vsyncadd [#allocation4], %s241
      %s244 = sshll.u32 [#allocation10], 4
      %s245 = int_to_ptr.vmem [resolvable:$true] %s244
      %247 = dma.vmem_to_hbm [thread:$0]  %s245, 128, %s6, [#allocation4]
    $region45: #{tpu_custom_call.1} parent=1 // pred_fallthru
      _
    // Predicated region
    $region46: #{tpu_custom_call.1} parent=1 // pred_check
      _
    $region47: #{tpu_custom_call.1} parent=1 // pred_check_branch
      %249 = sbr.rel (0) target = $region49
    $region48: #{tpu_custom_call.1} parent=1 // pred_region
      %s251 = ssub.s32 128, 128
      %252 = vsyncadd [#allocation12], %s251
      %s254 = sshll.u32 [#allocation11], 4
      %s255 = int_to_ptr.vmem [resolvable:$true] %s254
      %257 = dma.vmem_to_hbm [thread:$0]  %s255, 128, %s7, [#allocation12]
    $region49: #{tpu_custom_call.1} parent=1 // pred_fallthru
      _
    // Predicated region
    $region50: #{tpu_custom_call.1} parent=1 // pred_check
      _
    $region51: #{tpu_custom_call.1} parent=1 // pred_check_branch
      %259 = sbr.rel (0) target = $region53
    $region52: #{tpu_custom_call.1} parent=1 // pred_region
      %s261 = ssub.s32 64, 64
      %262 = vsyncadd [#allocation12], %s261
      %s264 = sshll.u32 [#allocation13], 4
      %s265 = int_to_ptr.vmem [resolvable:$true] %s264
      %267 = dma.vmem_to_hbm [thread:$0]  %s265, 64, %s8, [#allocation12]
    $region53: #{tpu_custom_call.1} parent=1 // pred_fallthru
      _
    // Predicated region
    $region54: #{tpu_custom_call.1} parent=1 // pred_check
      _
    $region55: #{tpu_custom_call.1} parent=1 // pred_check_branch
      %269 = sbr.rel (0) target = $region57
    $region56: #{tpu_custom_call.1} parent=1 // pred_region
      %s271 = ssub.s32 64, 64
      %272 = vsyncadd [#allocation15], %s271
      %s274 = sshll.u32 [#allocation14], 4
      %s275 = int_to_ptr.vmem [resolvable:$true] %s274
      %277 = dma.vmem_to_hbm [thread:$0]  %s275, 64, %s9, [#allocation15]
    $region57: #{tpu_custom_call.1} parent=1 // pred_fallthru
      _
    // Predicated region
    $region58: #{tpu_custom_call.1} parent=1 // pred_check
      _
    $region59: #{tpu_custom_call.1} parent=1 // pred_check_branch
      %279 = sbr.rel (0) target = $region61
    $region60: #{tpu_custom_call.1} parent=1 // pred_region
      %280 = dma.done [#allocation4], 128
    $region61: #{tpu_custom_call.1} parent=1 // pred_fallthru
      _
    // Predicated region
    $region62: #{tpu_custom_call.1} parent=1 // pred_check
      _
    $region63: #{tpu_custom_call.1} parent=1 // pred_check_branch
      %282 = sbr.rel (0) target = $region65
    $region64: #{tpu_custom_call.1} parent=1 // pred_region
      %283 = dma.done [#allocation12], 128
    $region65: #{tpu_custom_call.1} parent=1 // pred_fallthru
      _
    // Predicated region
    $region66: #{tpu_custom_call.1} parent=1 // pred_check
      _
    $region67: #{tpu_custom_call.1} parent=1 // pred_check_branch
      %285 = sbr.rel (0) target = $region69
    $region68: #{tpu_custom_call.1} parent=1 // pred_region
      %286 = dma.done [#allocation12], 64
    $region69: #{tpu_custom_call.1} parent=1 // pred_fallthru
      _
    // Predicated region
    $region70: #{tpu_custom_call.1} parent=1 // pred_check
      _
    $region71: #{tpu_custom_call.1} parent=1 // pred_check_branch
      %288 = sbr.rel (0) target = $region73
    $region72: #{tpu_custom_call.1} parent=1 // pred_region
      %289 = dma.done [#allocation15], 64
    $region73: #{tpu_custom_call.1} parent=1 // pred_fallthru
      _
    %290 = vsyncpa [#allocation3], 1
    %291 = vsyncpa [#allocation6], 1
    %292 = vsyncpa [#allocation9], 1
    %293 = vsyncpa [#allocation4], 1
    %294 = vsyncpa [#allocation12], 1
    %295 = vsyncpa [#allocation15], 1

</llo_original>
